<compile_context>
chip_gen: v7x
topology: tpu7x:2x2x1
jax: 0.10.0
libtpu: 0.0.40
codegen_flags: <defaults>
</compile_context>

<pallas_src>
import jax
import jax.numpy as jnp
from jax import lax
from jax.experimental import pallas as pl
from jax.experimental.pallas import tpu as pltpu

_LANE = 128                            # lane-dense padding for the class dim
_NBUF = 8                              # outstanding row-gather DMAs (power of 2)
_VMEM_TABLE_BYTES = 16 * 1024 * 1024   # f32-table budget for the VMEM-resident path
                                       # (conservative for v7x's 64 MiB VMEM; v5e/v6e
                                       #  could afford considerably more)


def _round_up(x, m):
    return ((x + m - 1) // m) * m


def _choose_bags_per_block(batch):
    """Batch tile: fill the MXU M dim (<=256) but keep >=2 grid blocks when the
    batch allows, so v7x's two TensorCores both get work (harmless on v5e/v6e)."""
    b8 = _round_up(max(int(batch), 1), 8)
    if b8 <= 16:
        return 8
    return min(256, _round_up(pl.cdiv(b8, 2), 8))


def _make_vmem_table_kernel(bags):
    """Embedding table resident in VMEM; in-VMEM dynamic row gather per token."""

    def kernel(offs_ref, text_ref, emb_ref, w_ref, b_ref, o_ref, mean_buf):
        base = pl.program_id(0) * bags
        mean_buf[...] = jnp.zeros_like(mean_buf)

        def bag_body(i, carry):
            start = offs_ref[base + i]
            end = offs_ref[base + i + 1]

            def tok_body(t, c):
                tok = text_ref[t]
                # Single-row update of this bag's accumulator row (f32 rows keep
                # the dynamic sublane slice on unpacked 32-bit data).
                mean_buf[pl.ds(i, 1), :] = (
                    mean_buf[pl.ds(i, 1), :] + emb_ref[pl.ds(tok, 1), :]
                )
                return c

            lax.fori_loop(start, end, tok_body, 0)

            cnt = jnp.maximum(end - start, 1).astype(jnp.float32)
            mean_buf[pl.ds(i, 1), :] = mean_buf[pl.ds(i, 1), :] * (1.0 / cnt)
            return carry

        lax.fori_loop(0, bags, bag_body, 0)

        # Fused FC: bf16 MXU inputs, f32 accumulate, lane-dense (bags, C_pad) store.
        o_ref[...] = (
            jnp.dot(
                mean_buf[...].astype(jnp.bfloat16),
                w_ref[...],
                preferred_element_type=jnp.float32,
            )
            + b_ref[...]
        )

    return kernel


def _make_hbm_gather_kernel(bags, nbuf):
    """Embedding table stays in HBM; per-token rows gathered via an nbuf-deep DMA ring."""

    def kernel(offs_ref, seg_ref, text_ref, w_ref, b_ref, emb_hbm, o_ref,
               row_buf, sem, acc):
        base = pl.program_id(0) * bags
        blk_start = offs_ref[base]
        n_tok = offs_ref[base + bags] - blk_start

        acc[...] = jnp.zeros_like(acc)

        def row_copy(t, slot):
            # One helper builds both start and wait descriptors -> identical slices.
            tok = text_ref[blk_start + t]
            return pltpu.make_async_copy(
                emb_hbm.at[pl.ds(tok, 1), :], row_buf.at[slot], sem.at[slot]
            )

        # Prime: up to `nbuf` outstanding row gathers.
        for j in range(nbuf):
            @pl.when(j < n_tok)
            def _(j=j):
                row_copy(j, j).start()

        def tok_body(t, carry):
            slot = t & (nbuf - 1)
            # SMEM scalar reads (bag id + descriptor token id) hoisted before wait.
            local_bag = seg_ref[blk_start + t] - base
            cur = row_copy(t, slot)
            cur.wait()
            row = row_buf[slot].astype(jnp.float32)            # (1, D)

            @pl.when(t + nbuf < n_tok)
            def _():
                row_copy(t + nbuf, slot).start()

            # Single-row accumulate (not a masked (BAGS, D) broadcast).
            acc[pl.ds(local_bag, 1), :] = acc[pl.ds(local_bag, 1), :] + row
            return carry

        lax.fori_loop(0, n_tok, tok_body, 0)

        # Per-bag sums -> means; counts come straight from the SMEM offsets.
        def scale_body(i, carry):
            start = offs_ref[base + i]
            end = offs_ref[base + i + 1]
            cnt = jnp.maximum(end - start, 1).astype(jnp.float32)
            acc[pl.ds(i, 1), :] = acc[pl.ds(i, 1), :] * (1.0 / cnt)
            return carry

        lax.fori_loop(0, bags, scale_body, 0)

        o_ref[...] = (
            jnp.dot(
                acc[...].astype(jnp.bfloat16),
                w_ref[...],
                preferred_element_type=jnp.float32,
            )
            + b_ref[...]
        )

    return kernel


def text_classification_forward(params, text, offsets, *, force_hbm_gather=False):
    """EmbeddingBag(mode='mean') + Linear forward.

    params:  'embedding' (V, D), 'fc_w' (C, D), 'fc_b' (C,)
    text:    (T,) int32 flat token ids
    offsets: (B,) int32 non-decreasing bag start offsets with offsets[0] == 0
             (PyTorch EmbeddingBag convention; unsorted offsets are unsupported).
    """
    emb = params["embedding"]
    fc_w = params["fc_w"]
    fc_b = params["fc_b"]
    V, D = emb.shape
    C = fc_w.shape[0]
    B = int(offsets.shape[0])
    T = int(text.shape[0])

    bags = _choose_bags_per_block(B)
    B_pad = _round_up(B, bags)
    C_pad = _round_up(C, _LANE)
    grid = (B_pad // bags,)

    text = text.astype(jnp.int32)
    offsets = offsets.astype(jnp.int32)
    # offs_ext[i] .. offs_ext[i+1] delimit bag i; padded bags are empty.
    offs_ext = jnp.concatenate(
        [offsets, jnp.full((B_pad + 1 - B,), T, dtype=jnp.int32)]
    )

    # FC params: bf16 weight (native MXU input dtype), lane-dense padding; f32 bias.
    w_pad = jnp.zeros((D, C_pad), jnp.bfloat16).at[:, :C].set(
        fc_w.T.astype(jnp.bfloat16)
    )
    b_pad = jnp.zeros((1, C_pad), jnp.float32).at[:, :C].set(
        fc_b.astype(jnp.float32).reshape(1, C)
    )

    out_shape = jax.ShapeDtypeStruct((B_pad, C_pad), jnp.float32)
    table_f32_bytes = V * D * 4
    use_vmem_table = (not force_hbm_gather) and table_f32_bytes <= _VMEM_TABLE_BYTES

    if use_vmem_table:
        grid_spec = pltpu.PrefetchScalarGridSpec(
            num_scalar_prefetch=2,
            grid=grid,
            in_specs=[
                # Constant block index -> the whole table is DMA'd into VMEM once.
                pl.BlockSpec((V, D), lambda i, *_: (0, 0)),
                pl.BlockSpec((D, C_pad), lambda i, *_: (0, 0)),
                pl.BlockSpec((1, C_pad), lambda i, *_: (0, 0)),
            ],
            out_specs=pl.BlockSpec((bags, C_pad), lambda i, *_: (i, 0)),
            scratch_shapes=[pltpu.VMEM((bags, D), jnp.float32)],
        )
        vmem_limit = max(32 << 20, min(2 * table_f32_bytes + (16 << 20), 56 << 20))
        out_pad = pl.pallas_call(
            _make_vmem_table_kernel(bags),
            out_shape=out_shape,
            grid_spec=grid_spec,
            compiler_params=pltpu.CompilerParams(
                dimension_semantics=("parallel",),
                vmem_limit_bytes=vmem_limit,
            ),
        )(offs_ext, text, emb.astype(jnp.float32), w_pad, b_pad)
    else:
        # Per-token bag id (tokens are contiguous per bag for sorted offsets).
        positions = jnp.arange(T, dtype=jnp.int32)
        seg = (jnp.searchsorted(offsets, positions, side="right") - 1).astype(jnp.int32)
        grid_spec = pltpu.PrefetchScalarGridSpec(
            num_scalar_prefetch=3,
            grid=grid,
            in_specs=[
                pl.BlockSpec((D, C_pad), lambda i, *_: (0, 0)),
                pl.BlockSpec((1, C_pad), lambda i, *_: (0, 0)),
                pl.BlockSpec(memory_space=pl.ANY),        # bf16 table stays in HBM
            ],
            out_specs=pl.BlockSpec((bags, C_pad), lambda i, *_: (i, 0)),
            scratch_shapes=[
                pltpu.VMEM((_NBUF, 1, D), jnp.bfloat16),  # gather ring buffers
                pltpu.SemaphoreType.DMA((_NBUF,)),
                pltpu.VMEM((bags, D), jnp.float32),       # per-bag sums / means
            ],
        )
        out_pad = pl.pallas_call(
            _make_hbm_gather_kernel(bags, _NBUF),
            out_shape=out_shape,
            grid_spec=grid_spec,
            compiler_params=pltpu.CompilerParams(
                dimension_semantics=("parallel",),
                vmem_limit_bytes=32 << 20,
            ),
        )(offs_ext, seg, text, w_pad, b_pad, emb.astype(jnp.bfloat16))

    return out_pad[:B, :C]


def init_params(key, vocab_size, embed_dim, num_class):
    initrange = 0.5
    k1, k2 = jax.random.split(key, 2)
    embedding = jax.random.uniform(
        k1, (vocab_size, embed_dim), minval=-initrange, maxval=initrange,
        dtype=jnp.float32,
    )
    fc_w = jax.random.uniform(
        k2, (num_class, embed_dim), minval=-initrange, maxval=initrange,
        dtype=jnp.float32,
    )
    fc_b = jnp.zeros((num_class,), dtype=jnp.float32)
    return {"embedding": embedding, "fc_w": fc_w, "fc_b": fc_b}


def _reference_forward(params, text, offsets, table_dtype):
    """Pure-JAX reference; emulates the kernel's bf16 MXU inputs so the comparison
    tolerance stays tight."""
    emb = params["embedding"].astype(table_dtype).astype(jnp.float32)
    rows = emb[text]
    T = int(text.shape[0])
    offs = [int(o) for o in offsets] + [T]
    D = emb.shape[1]
    means = []
    for b in range(len(offs) - 1):
        s, e = offs[b], offs[b + 1]
        if e > s:
            means.append(rows[s:e].mean(axis=0))
        else:
            means.append(jnp.zeros((D,), jnp.float32))
    mean = jnp.stack(means, axis=0)
    mean_bf = mean.astype(jnp.bfloat16).astype(jnp.float32)
    w_bf = params["fc_w"].astype(jnp.bfloat16).astype(jnp.float32)
    return mean_bf @ w_bf.T + params["fc_b"].astype(jnp.float32)


if __name__ == "__main__":
    vocab_size = 128
    embed_dim = 32
    num_class = 4
    batch = 2

    key = jax.random.PRNGKey(0)
    pkey, tkey = jax.random.split(key)
    params = init_params(pkey, vocab_size, embed_dim, num_class)

    # Two bags of tokens (lengths 5 and 3), flattened PyTorch EmbeddingBag style.
    text = jax.random.randint(tkey, (8,), 0, vocab_size, dtype=jnp.int32)
    offsets = jnp.array([0, 5], dtype=jnp.int32)

    # Fast path: f32 table resident in VMEM.
    out_vmem = jax.block_until_ready(
        text_classification_forward(params, text, offsets)
    )
    # Large-table path: bf16 table in HBM, 8-deep DMA gather ring.
    out_hbm = jax.block_until_ready(
        text_classification_forward(params, text, offsets, force_hbm_gather=True)
    )

    ref_f32 = _reference_forward(params, text, offsets, jnp.float32)
    ref_bf16 = _reference_forward(params, text, offsets, jnp.bfloat16)

    assert out_vmem.shape == (batch, num_class)
    assert out_hbm.shape == (batch, num_class)
    assert jnp.allclose(out_vmem, ref_f32, atol=5e-3, rtol=5e-3), (out_vmem, ref_f32)
    assert jnp.allclose(out_hbm, ref_bf16, atol=5e-3, rtol=5e-3), (out_hbm, ref_bf16)
    print("KERNEL_OK")
</pallas_src>

<mosaic_0001>
module attributes {stable_mosaic.version = 11 : i64} {
  func.func @kernel(%arg0: i32, %arg1: memref<9xi32, #tpu.memory_space<smem>>, %arg2: memref<8xi32, #tpu.memory_space<smem>>, %arg3: memref<128x32xf32, #tpu.memory_space<vmem>>, %arg4: memref<32x128xbf16, #tpu.memory_space<vmem>>, %arg5: memref<1x128xf32, #tpu.memory_space<vmem>>, %arg6: memref<8x128xf32, #tpu.memory_space<vmem>>, %arg7: memref<8x32xf32, #tpu.memory_space<vmem>>) attributes {dimension_semantics = [#tpu.dimension_semantics<parallel>], iteration_bounds = array<i64: 1>, scalar_prefetch = 2 : i64, scratch_operands = 1 : i64, tpu.core_type = #tpu.core_type<tc>, window_params = [{pipeline_mode = #tpu.pipeline_mode<synchronous>, transform_indices = @transform_0, window_bounds = array<i64: 128, 32>}, {pipeline_mode = #tpu.pipeline_mode<synchronous>, transform_indices = @transform_1, window_bounds = array<i64: 32, 128>}, {pipeline_mode = #tpu.pipeline_mode<synchronous>, transform_indices = @transform_2, window_bounds = array<i64: 1, 128>}, {transform_indices = @transform_3, window_bounds = array<i64: 8, 128>}]} {
    %c8_i32 = arith.constant 8 : i32
    %0 = arith.muli %arg0, %c8_i32 : i32
    %cst = arith.constant 0.000000e+00 : f32
    %1 = vector.broadcast %cst : f32 to vector<8x32xf32>
    %c0 = arith.constant 0 : index
    %c0_0 = arith.constant 0 : index
    %2 = vector.load %arg7[%c0, %c0_0] : memref<8x32xf32, #tpu.memory_space<vmem>>, vector<8x32xf32>
    tpu.vector_store %arg7[%c0, %c0_0], %1 {strides = array<i32>} : memref<8x32xf32, #tpu.memory_space<vmem>>, vector<8x32xf32>,
    %c0_i32 = arith.constant 0 : i32
    %c8_i32_1 = arith.constant 8 : i32
    %3 = arith.addi %c0_i32, %c8_i32_1 : i32
    %c1_i32 = arith.constant 1 : i32
    scf.for %arg8 = %c0_i32 to %3 step %c1_i32  : i32 {
      %12 = arith.addi %0, %arg8 : i32
      %13 = arith.index_cast %12 : i32 to index
      %14 = memref.load %arg1[%13] : memref<9xi32, #tpu.memory_space<smem>>
      %15 = arith.addi %0, %arg8 : i32
      %c1_i32_12 = arith.constant 1 : i32
      %16 = arith.addi %15, %c1_i32_12 : i32
      %17 = arith.index_cast %16 : i32 to index
      %18 = memref.load %arg1[%17] : memref<9xi32, #tpu.memory_space<smem>>
      %c0_i32_13 = arith.constant 0 : i32
      %19 = arith.subi %18, %14 : i32
      %20 = arith.addi %14, %19 : i32
      %c1_i32_14 = arith.constant 1 : i32
      scf.for %arg9 = %14 to %20 step %c1_i32_14  : i32 {
        %31 = arith.index_cast %arg9 : i32 to index
        %32 = memref.load %arg2[%31] : memref<8xi32, #tpu.memory_space<smem>>
        %33 = arith.index_cast %arg8 : i32 to index
        %c0_19 = arith.constant 0 : index
        %34 = vector.load %arg7[%33, %c0_19] : memref<8x32xf32, #tpu.memory_space<vmem>>, vector<1x32xf32>
        %35 = arith.index_cast %32 : i32 to index
        %c0_20 = arith.constant 0 : index
        %36 = vector.load %arg3[%35, %c0_20] : memref<128x32xf32, #tpu.memory_space<vmem>>, vector<1x32xf32>
        %37 = arith.addf %34, %36 : vector<1x32xf32>
        %38 = arith.index_cast %arg8 : i32 to index
        %c0_21 = arith.constant 0 : index
        %39 = vector.load %arg7[%38, %c0_21] : memref<8x32xf32, #tpu.memory_space<vmem>>, vector<1x32xf32>
        tpu.vector_store %arg7[%38, %c0_21], %37 {strides = array<i32>} : memref<8x32xf32, #tpu.memory_space<vmem>>, vector<1x32xf32>,
      }
      %21 = arith.subi %18, %14 : i32
      %c1_i32_15 = arith.constant 1 : i32
      %22 = arith.maxsi %21, %c1_i32_15 : i32
      %23 = arith.sitofp %22 : i32 to f32
      %24 = arith.index_cast %arg8 : i32 to index
      %c0_16 = arith.constant 0 : index
      %25 = vector.load %arg7[%24, %c0_16] : memref<8x32xf32, #tpu.memory_space<vmem>>, vector<1x32xf32>
      %cst_17 = arith.constant 1.000000e+00 : f32
      %26 = arith.divf %cst_17, %23 : f32
      %27 = vector.broadcast %26 : f32 to vector<1x32xf32>
      %28 = arith.mulf %25, %27 : vector<1x32xf32>
      %29 = arith.index_cast %arg8 : i32 to index
      %c0_18 = arith.constant 0 : index
      %30 = vector.load %arg7[%29, %c0_18] : memref<8x32xf32, #tpu.memory_space<vmem>>, vector<1x32xf32>
      tpu.vector_store %arg7[%29, %c0_18], %28 {strides = array<i32>} : memref<8x32xf32, #tpu.memory_space<vmem>>, vector<1x32xf32>,
    }
    %c8_i32_2 = arith.constant 8 : i32
    %c0_3 = arith.constant 0 : index
    %c0_4 = arith.constant 0 : index
    %4 = vector.load %arg7[%c0_3, %c0_4] : memref<8x32xf32, #tpu.memory_space<vmem>>, vector<8x32xf32>
    %5 = arith.truncf %4 : vector<8x32xf32> to vector<8x32xbf16>
    %c0_5 = arith.constant 0 : index
    %c0_6 = arith.constant 0 : index
    %6 = vector.load %arg4[%c0_5, %c0_6] : memref<32x128xbf16, #tpu.memory_space<vmem>>, vector<32x128xbf16>
    %cst_7 = arith.constant dense<0.000000e+00> : vector<8x128xf32>
    %7 = tpu.matmul %5, %6, %cst_7 {dimension_numbers = #tpu.dot_dimension_numbers<[1], [0], [0], [1], [0, 0, 1, 1], [], []>} : vector<8x32xbf16>, vector<32x128xbf16>, vector<8x128xf32> -> vector<8x128xf32>
    %c0_8 = arith.constant 0 : index
    %c0_9 = arith.constant 0 : index
    %8 = vector.load %arg5[%c0_8, %c0_9] : memref<1x128xf32, #tpu.memory_space<vmem>>, vector<1x128xf32>
    %9 = vector.broadcast %8 : vector<1x128xf32> to vector<8x128xf32>
    %10 = arith.addf %7, %9 : vector<8x128xf32>
    %c0_10 = arith.constant 0 : index
    %c0_11 = arith.constant 0 : index
    %11 = vector.load %arg6[%c0_10, %c0_11] : memref<8x128xf32, #tpu.memory_space<vmem>>, vector<8x128xf32>
    tpu.vector_store %arg6[%c0_10, %c0_11], %10 {strides = array<i32>} : memref<8x128xf32, #tpu.memory_space<vmem>>, vector<8x128xf32>,
    return
  }
  func.func @transform_0(%arg0: i32, %arg1: memref<9xi32, #tpu.memory_space<smem>>, %arg2: memref<8xi32, #tpu.memory_space<smem>>) -> (i32, i32) {
    %c0_i32 = arith.constant 0 : i32
    %c0_i32_0 = arith.constant 0 : i32
    %c0_i32_1 = arith.constant 0 : i32
    return %c0_i32, %c0_i32_0 : i32, i32
  }
  func.func @transform_1(%arg0: i32, %arg1: memref<9xi32, #tpu.memory_space<smem>>, %arg2: memref<8xi32, #tpu.memory_space<smem>>) -> (i32, i32) {
    %c0_i32 = arith.constant 0 : i32
    %c0_i32_0 = arith.constant 0 : i32
    %c0_i32_1 = arith.constant 0 : i32
    return %c0_i32, %c0_i32_0 : i32, i32
  }
  func.func @transform_2(%arg0: i32, %arg1: memref<9xi32, #tpu.memory_space<smem>>, %arg2: memref<8xi32, #tpu.memory_space<smem>>) -> (i32, i32) {
    %c0_i32 = arith.constant 0 : i32
    %c0_i32_0 = arith.constant 0 : i32
    %c0_i32_1 = arith.constant 0 : i32
    return %c0_i32, %c0_i32_0 : i32, i32
  }
  func.func @transform_3(%arg0: i32, %arg1: memref<9xi32, #tpu.memory_space<smem>>, %arg2: memref<8xi32, #tpu.memory_space<smem>>) -> (i32, i32) {
    %c0_i32 = arith.constant 0 : i32
    %c0_i32_0 = arith.constant 0 : i32
    return %arg0, %c0_i32 : i32, i32
  }
}

</mosaic_0001>

<llo_original>
// kernel: tpu_custom_call.1
$region0: #{tpu_custom_call.1}
  #allocation0 [shape = 'u32[]', space=smem, size = 0x4, offset = 0x4, fixed_abs, tag = 'smem constant byte address 0x4 - core index']
  #allocation1 [shape = 'u32[144,128]{1,0:T(1,128)}', space=vmem, size = 0x12000, scoped, tag = 'internal scratch']
  #allocation2 [shape = 'f32[8,32]{1,0:T(8,128)}', space=vmem, size = 0x1000, scoped, tag = 'scratch operand']
  #allocation3 [shape = 's32[1]{0}', space=sflag, size = 0x4, scoped, tag = 'scoped memory for tpu_custom_call.1']
  #allocation4 [shape = 'u8[512]{0}', space=smem, size = 0x200, scoped, tag = 'prefetched SMEM operand 0']
  #allocation5 [shape = 'u8[512]{0}', space=smem, size = 0x200, scoped, tag = 'prefetched SMEM operand 1']
  %s0 = inlined_call_operand.vmem [shape: s32[9], index: 0, kind: input, shape index: {}]
  %s1 = inlined_call_operand.vmem [shape: s32[8], index: 1, kind: input, shape index: {}]
  %s2 = inlined_call_operand.vmem [shape: f32[128,32], index: 2, kind: input, shape index: {}]
  %s3 = inlined_call_operand.vmem [shape: bf16[32,128], index: 3, kind: input, shape index: {}]
  %s4 = inlined_call_operand.vmem [shape: f32[1,128], index: 4, kind: input, shape index: {}]
  %s5 = inlined_call_operand.hbm [shape: f32[8,128], index: 5, kind: output, shape index: {}]
  %s6 = sld [smem:[#allocation0]]
  $region36: #{tpu_custom_call.1} parent=0
    _
  %s8 = ssub.s32 1, %s6
  %s9 = scalar_select 0, %s8, %s6
  %s10 = sshll.u32 %s0, 4
  %s11 = int_to_ptr.vmem [resolvable:$true] %s10
  %13 = dma.vmem_to_smem %s11, 16, [#allocation4], [#allocation3]
  %s14 = sshll.u32 %s1, 4
  %s15 = int_to_ptr.vmem [resolvable:$true] %s14
  %17 = dma.vmem_to_smem %s15, 16, [#allocation5], [#allocation3]
  %18 = dma.done [#allocation3], 32
  %19 = sfence
  $region1: #{tpu_custom_call.1} parent=0
    #allocation6 [shape = 'u8[4096]{0}', space=vmem, size = 0x1000, scoped, tag = 'output window, operand 0, single buffered']
    #allocation7 [shape = 's32[1]{0}', space=sflag, size = 0x4, scoped, tag = 'scoped memory for tpu_custom_call.1']
    %20 = vsyncpa [#allocation7], 0
    // Predicated region
    $region2: #{tpu_custom_call.1} parent=1 // pred_check
      _
    $region3: #{tpu_custom_call.1} parent=1 // pred_check_branch
      %22 = sbr.rel (0) target = $region5
    $region4: #{tpu_custom_call.1} parent=1 // pred_region
      _
    $region5: #{tpu_custom_call.1} parent=1 // pred_fallthru
      _
    // Predicated region
    $region6: #{tpu_custom_call.1} parent=1 // pred_check
      _
    $region7: #{tpu_custom_call.1} parent=1 // pred_check_branch
      %24 = sbr.rel (0) target = $region9
    $region8: #{tpu_custom_call.1} parent=1 // pred_region
      _
    $region9: #{tpu_custom_call.1} parent=1 // pred_fallthru
      _
    // Predicated region
    $region10: #{tpu_custom_call.1} parent=1 // pred_check
      _
    $region11: #{tpu_custom_call.1} parent=1 // pred_check_branch
      %26 = sbr.rel (0) target = $region13
    $region12: #{tpu_custom_call.1} parent=1 // pred_region
      _
    $region13: #{tpu_custom_call.1} parent=1 // pred_fallthru
      _
    %s28 = smul.u32 0, 8
    %vm29 = vcmask 261120
    %30 = vst.msk [vmem:[#allocation2] sm:$0xff] %vm29, 0.0
    loop: start=0, step=1, limit=8
    $region14: #{tpu_custom_call.1} parent=1 // loop_pre_header
      _
    $region15: #{tpu_custom_call.1} parent=1 // loop_header
      %s32 = sphi 0, %s36
      %p33 = scmp.ge.s32.totalorder %s32, 8
    $region16: #{tpu_custom_call.1} parent=1 // loop_header_branch
      %35 = sbr.rel (%p33) target = $region20
    $region17: #{tpu_custom_call.1} parent=1 // loop_body
      %s37 = sadd.s32 %s28, %s32
      %s38 = sld [smem:[#allocation4 + %s37]]
      %s39 = sadd.s32 %s37, 1
      %s40 = sld [smem:[#allocation4 + %s39]]
      // While loop
      $region21: #{tpu_custom_call.1} parent=17 // loop_pre_header
        _
      $region22: #{tpu_custom_call.1} parent=17 // loop_header
        %s42 = sphi %s38, %s44
        %p43 = scmp.ge.s32.totalorder %s42, %s40
      $region23: #{tpu_custom_call.1} parent=17 // loop_header_branch
        %46 = sbr.rel (%p43) target = $region27
      $region24: #{tpu_custom_call.1} parent=17 // loop_body
        %s47 = sld [smem:[#allocation5 + %s42]]
        %s48 = scalar_lea.vmem [#allocation2], %s32
        %v49 = vld [vmem:[%s48] sm:$0x1]
        %s50 = scalar_lea.vmem %s2, %s47
        %v51 = vld [vmem:[%s50] sm:$0x1]
        %v52 = vadd.f32 %v49, %v51
        %vm53 = vcmask 253952
        %54 = vst.msk [vmem:[%s48] sm:$0x1] %vm53, %v52
      $region25: #{tpu_custom_call.1} parent=17 // loop_footer
        %s44 = sadd.s32 %s42, 1
      $region26: #{tpu_custom_call.1} parent=17 // loop_footer_branch
        %41 = sbr.rel target = $region22
      $region27: #{tpu_custom_call.1} parent=17 // loop_exit
        _
      %s55 = ssub.s32 %s40, %s38
      %p56 = scmp.gt.s32.totalorder %s55, 1
      %s57 = scalar_select %p56, %s55, 1
      %s58 = scvt.s32.f32 %s57
      %s59 = scalar_lea.vmem [#allocation2], %s32
      %v60 = vld [vmem:[%s59] sm:$0x1]
      %v61 = vstv %s58
      %v62 = vrcp.pop %v61
      %s63 = vtos %v62
      %v64 = vstv %s63
      %v65 = vmul.f32 %v60, %v64
      %vm66 = vcmask 253952
      %67 = vst.msk [vmem:[%s59] sm:$0x1] %vm66, %v65
    $region18: #{tpu_custom_call.1} parent=1 // loop_footer
      %s36 = sadd.s32 1, %s32
    $region19: #{tpu_custom_call.1} parent=1 // loop_footer_branch
      %31 = sbr.rel target = $region15
    $region20: #{tpu_custom_call.1} parent=1 // loop_exit
      _
    %v68 = vld [vmem:[#allocation2] sm:$0xff]
    %v69 = vpack.c.bf16 %v68, %v68
    %v70 = vld [vmem:[%s3] sm:$0xf]
    %v71 = vld [vmem:[%s3 + $0x4] sm:$0xf]
    %v72 = vld [vmem:[%s3 + $0x8] sm:$0xf]
    %v73 = vld [vmem:[%s3 + $0xc] sm:$0xf]
    %v74 = vld [vmem:[%s4] sm:$0x1]
    %v76 = vlaneseq
    %v77 = vshrl.u32 %v76, 7
    %v78 = vsub.s32 0, %v77
    %v79 = vrot.slane %v74, %v78
    %v85 = vunpack.c.l.b16 %v70
    %v86 = vunpack.c.l.b16 %v71
    %v87 = vunpack.c.l.b16 %v72
    %v88 = vunpack.c.l.b16 %v73
    %v89 = vpack.c.b16 %v86, %v85
    %v90 = vpack.c.b16 %v88, %v87
    %v94 = vsel %vm29, %v69, 0
    %96 = vmatprep.subr.bf16.mxu0 0
    %97 = vmatpush1.bf16.msra.mxu0 %v89
    %98 = vmatprep.subr.bf16.mxu0 0
    %99 = vmatpush1.bf16.msra.mxu0 %v90
    %100 = vmatprep.subr.bf16.mxu0 0
    %101 = vmatpush1.bf16.msra.mxu0 0
    %102 = vmatprep.subr.bf16.mxu0 0
    %103 = vmatpush1.bf16.msra.mxu0 0
    %104 = vmatprep.subr.bf16.mxu0 0
    %105 = vmatpush1.bf16.msra.mxu0 0
    %106 = vmatprep.subr.bf16.mxu0 0
    %107 = vmatpush1.bf16.msra.mxu0 0
    %108 = vmatprep.subr.bf16.mxu0 0
    %109 = vmatpush1.bf16.msra.mxu0 0
    %110 = vmatprep.subr.bf16.mxu0 0
    %111 = vmatpush1.bf16.msra.mxu0 0
    %112 = vmatprep.subr.bf16.mxu0 0
    %113 = vmatpush1.bf16.msra.mxu0 0
    %114 = vmatprep.subr.bf16.mxu0 0
    %115 = vmatpush1.bf16.msra.mxu0 0
    %116 = vmatprep.subr.bf16.mxu0 0
    %117 = vmatpush1.bf16.msra.mxu0 0
    %118 = vmatprep.subr.bf16.mxu0 0
    %119 = vmatpush1.bf16.msra.mxu0 0
    %120 = vmatprep.subr.bf16.mxu0 0
    %121 = vmatpush1.bf16.msra.mxu0 0
    %122 = vmatprep.subr.bf16.mxu0 0
    %123 = vmatpush1.bf16.msra.mxu0 0
    %124 = vmatprep.subr.bf16.mxu0 0
    %125 = vmatpush1.bf16.msra.mxu0 0
    %126 = vmatprep.subr.bf16.mxu0 0
    %127 = vmatpush1.bf16.msra.mxu0 0
    %128 = vmatprep.mubr.bf16.mxu0 0
    %129 = vmatmul.mubr.bf16.gmra.mrb[0].mxu0 %v94
    %v130 = vpop.f32.mrb[0].mxu0
    %v131 = vadd.f32 %v79, %v130
    %v132 = vpop.f32.mrb[0].mxu0
    %v133 = vpop.f32.mrb[0].mxu0
    %v134 = vpop.f32.mrb[0].mxu0
    %135 = vdwg.mxu0
    %136 = vst [vmem:[#allocation6] sm:$0xff] %v131
    // Predicated region
    $region28: #{tpu_custom_call.1} parent=1 // pred_check
      _
    $region29: #{tpu_custom_call.1} parent=1 // pred_check_branch
      %138 = sbr.rel (0) target = $region31
    $region30: #{tpu_custom_call.1} parent=1 // pred_region
      %s140 = ssub.s32 128, 128
      %141 = vsyncadd [#allocation7], %s140
      %s143 = sshll.u32 [#allocation6], 4
      %s144 = int_to_ptr.vmem [resolvable:$true] %s143
      %146 = dma.vmem_to_hbm [thread:$0]  %s144, 128, %s5, [#allocation7]
    $region31: #{tpu_custom_call.1} parent=1 // pred_fallthru
      _
    // Predicated region
    $region32: #{tpu_custom_call.1} parent=1 // pred_check
      _
    $region33: #{tpu_custom_call.1} parent=1 // pred_check_branch
      %148 = sbr.rel (0) target = $region35
    $region34: #{tpu_custom_call.1} parent=1 // pred_region
      %149 = dma.done [#allocation7], 128
    $region35: #{tpu_custom_call.1} parent=1 // pred_fallthru
      _
    %150 = vsyncpa [#allocation7], 1

</llo_original>
